<compile_context>
chip_gen: v7x
topology: tpu7x:2x2x1
jax: 0.10.0
libtpu: 0.0.40
codegen_flags: <defaults>
</compile_context>

<pallas_src>
import jax
import jax.numpy as jnp
from jax.experimental import pallas as pl
from jax.experimental.pallas import tpu as pltpu


def _rup(a, m):
    return (a + m - 1) // m * m


# -----------------------------------------------------------------------------
# Kernel bodies
# -----------------------------------------------------------------------------
def _rowfused_kernel(x_ref, w_ref, b_ref, o_ref):
    """Small-channel path: one lane-dense matmul per tile.

    x_ref: (TR, W*C_in)        -- TR full image rows, channels folded into lanes
    w_ref: (W*C_in, 2*W*half)  -- block-diagonal deconv weight, columns ordered
                                  (kh, w, kw, oc)
    b_ref: (1, 2*W*half)       -- f32 bias in the same column order
    o_ref: (TR, 2*W*half)      -- already in final (b, 2h+kh, 2w+kw, oc) order
    """
    acc = jnp.dot(x_ref[...], w_ref[...], preferred_element_type=jnp.float32)
    o_ref[...] = (acc + b_ref[...]).astype(o_ref.dtype)


def _split_kernel(x_ref, w_ref, b_ref, o_ref):
    """Large-channel path (2*C_out % 128 == 0): fused 4-tap matmul + kh split.

    x_ref: (TR*W, C_in)
    w_ref: (C_in, 4*C_out)     -- columns ordered (kh, kw, oc)
    b_ref: (1, 4*C_out)        -- f32
    o_ref: (TR, 2, W, 2*C_out) -- already in final element order
    """
    TR, _, W, half = o_ref.shape
    acc = jnp.dot(x_ref[...], w_ref[...], preferred_element_type=jnp.float32)
    # Per-half fused bias add + downcast; the column split at `half` is a
    # 128-aligned lane slice on this path, and the reshape only splits the
    # sublane (row) dim since W % 8 == 0.
    o_ref[:, 0, :, :] = (acc[:, :half] + b_ref[:, :half]).astype(
        o_ref.dtype).reshape(TR, W, half)
    o_ref[:, 1, :, :] = (acc[:, half:] + b_ref[:, half:]).astype(
        o_ref.dtype).reshape(TR, W, half)


# -----------------------------------------------------------------------------
# Wrapper
# -----------------------------------------------------------------------------
def upsample_forward(x, weight, bias, input_resolution, *, out_dtype=None,
                     vmem_live_budget_bytes=24 * 1024 * 1024):
    """ConvTranspose2d(k=2, s=2) upsample.

    x: (B, L, C_in) with L = H*W; weight: (C_in, C_out, 2, 2); bias: (C_out,).
    Returns (B, 4L, C_out) in `out_dtype` (defaults to x.dtype).  Pass
    out_dtype=jnp.bfloat16 to halve the dominant HBM writeback stream
    (accumulation and bias add stay in f32).
    """
    H, W = input_resolution
    B, L, C_in = x.shape
    assert L == H * W, "L must equal H*W"
    c_in_w, C_out, kh_, kw_ = weight.shape
    assert (c_in_w, kh_, kw_) == (C_in, 2, 2), "weight must be (C_in, C_out, 2, 2)"

    out_dtype = x.dtype if out_dtype is None else jnp.dtype(out_dtype)
    el_in = jnp.dtype(x.dtype).itemsize
    el_out = jnp.dtype(out_dtype).itemsize

    half = 2 * C_out          # (kw, oc) columns for one kh
    N = 4 * C_out             # all (kh, kw, oc) columns
    BH = B * H                # number of image rows

    bias_f32 = bias.astype(jnp.float32)
    # (C_in, C_out, 2, 2) -> (kh, C_in, kw*C_out + oc)
    w_k = jnp.transpose(weight, (2, 0, 3, 1)).reshape(2, C_in, half)

    # --- path selection: output HBM stream must be lane dense -----------------
    rowfused_w_bytes = (W * C_in) * (2 * W * half) * el_in
    lane_dense_split = (half % 128 == 0) and (W % 8 == 0)
    use_rowfused = (not lane_dense_split) and rowfused_w_bytes <= (16 << 20)
    # TODO(synk): a channel-padded variant of the split path for the rare case
    # (2*C_out % 128 != 0 AND W too large to row-fuse) would avoid falling back
    # to masked narrow-lane stores; not needed for this network's resolutions.

    compiler_params = pltpu.CompilerParams(
        dimension_semantics=("parallel",),          # shard rows across v7x TCs
        vmem_limit_bytes=48 * 1024 * 1024,          # <= v7x's 64 MiB physical
    )

    def tile_rows(per_row_bytes, fixed_bytes):
        """Image rows per tile from a live-VMEM budget (2*(in+out) + acc)."""
        budget = max(vmem_live_budget_bytes - fixed_bytes, per_row_bytes)
        tr = max(1, int(budget // per_row_bytes))
        if BH <= 8:
            return BH
        tr = min(tr, BH, (BH + 1) // 2)   # >= 2 grid steps for v7x megacore
        return max(8, (tr // 8) * 8)      # sublane-aligned block rows

    if use_rowfused:
        # ---- small-channel, row-fused lane-dense path ------------------------
        NW = 2 * W * half                     # output lanes per image row
        x2d = x.reshape(BH, W * C_in)         # contiguous (free) reshape
        # Block-diagonal weight:
        #   Wbd[v*C_in + i, kh*W*half + w*half + kw*C_out + oc]
        #     = (v == w) * weight[i, oc, kh, kw]
        eye = jnp.eye(W, dtype=jnp.float32)
        w_bd = jnp.einsum("vw,kic->vikwc", eye, w_k.astype(jnp.float32))
        w_bd = w_bd.reshape(W * C_in, NW).astype(x.dtype)
        b_bd = jnp.tile(bias_f32, 2 * W * 2).reshape(1, NW)

        in_row = _rup(W * C_in, 128) * el_in
        out_row = _rup(NW, 128) * el_out
        acc_row = _rup(NW, 128) * 4           # f32 matmul accumulator temp
        fixed = 2 * (w_bd.size * el_in + b_bd.size * 4) + (1 << 20)
        TR = tile_rows(2 * (in_row + out_row) + acc_row, fixed)
        grid = (pl.cdiv(BH, TR),)             # ragged last tile masked by Pallas

        cost = pl.CostEstimate(
            flops=2 * BH * W * C_in * N,
            bytes_accessed=(x2d.size * el_in + w_bd.size * el_in
                            + b_bd.size * 4 + BH * NW * el_out),
            transcendentals=0,
        )

        out2d = pl.pallas_call(
            _rowfused_kernel,
            out_shape=jax.ShapeDtypeStruct((BH, NW), out_dtype),
            grid=grid,
            in_specs=[
                # TODO(synk): pipeline_mode=pl.Buffered(3) on this input if an
                # xprof trace on v7x shows exposed input DMA between grid steps.
                pl.BlockSpec((TR, W * C_in), lambda i: (i, 0)),
                pl.BlockSpec((W * C_in, NW), lambda i: (0, 0)),
                pl.BlockSpec((1, NW), lambda i: (0, 0)),
            ],
            out_specs=pl.BlockSpec((TR, NW), lambda i: (i, 0)),
            compiler_params=compiler_params,
            cost_estimate=cost,
        )(x2d, w_bd, b_bd)
        # (BH, 2*W*2*C_out) is already in (b, 2h+kh, 2w+kw, oc) element order.
        return out2d.reshape(B, 4 * L, C_out)

    # ---- large-channel split path (2*C_out % 128 == 0, W % 8 == 0) -----------
    M = B * L
    x2d = x.reshape(M, C_in)
    # columns ordered (kh, kw, oc): col = kh*2*C_out + kw*C_out + oc
    w_mat = jnp.transpose(weight, (0, 2, 3, 1)).reshape(C_in, N).astype(x.dtype)
    b_mat = jnp.tile(bias_f32, 4).reshape(1, N)

    in_row = W * _rup(C_in, 128) * el_in
    out_row = 2 * _rup(W, 8) * _rup(half, 128) * el_out
    acc_row = W * _rup(N, 128) * 4            # f32 matmul accumulator temp
    fixed = 2 * (w_mat.size * el_in + b_mat.size * 4) + (1 << 20)
    TR = tile_rows(2 * (in_row + out_row) + acc_row, fixed)
    grid = (pl.cdiv(BH, TR),)                 # ragged last tile masked by Pallas

    cost = pl.CostEstimate(
        flops=2 * M * C_in * N,
        bytes_accessed=(x2d.size * el_in + w_mat.size * el_in + b_mat.size * 4
                        + BH * 2 * W * half * el_out),
        transcendentals=0,
    )

    out4d = pl.pallas_call(
        _split_kernel,
        out_shape=jax.ShapeDtypeStruct((BH, 2, W, half), out_dtype),
        grid=grid,
        in_specs=[
            pl.BlockSpec((TR * W, C_in), lambda i: (i, 0)),
            pl.BlockSpec((C_in, N), lambda i: (0, 0)),
            pl.BlockSpec((1, N), lambda i: (0, 0)),
        ],
        out_specs=pl.BlockSpec((TR, 2, W, half), lambda i: (i, 0, 0, 0)),
        compiler_params=compiler_params,
        cost_estimate=cost,
    )(x2d, w_mat, b_mat)
    # (B*H, 2, W, 2*C_out) is already in final element order -> free reshape.
    return out4d.reshape(B, 4 * L, C_out)


# -----------------------------------------------------------------------------
# Pure-JAX reference of the PyTorch forward (for verification)
# -----------------------------------------------------------------------------
def _reference(x, weight, bias, input_resolution):
    H, W = input_resolution
    B, L, C_in = x.shape
    C_out = weight.shape[1]
    xr = x.reshape(B, H, W, C_in)
    y = jnp.einsum("bhwi,iopq->bhpwqo", xr, weight)   # y[b, h, kh, w, kw, oc]
    y = y + bias.reshape(1, 1, 1, 1, 1, C_out)
    return y.reshape(B, 4 * L, C_out)


if __name__ == "__main__":
    key = jax.random.PRNGKey(0)
    k1, k2, k3 = jax.random.split(key, 3)

    # --- demo config (small channels -> row-fused lane-dense path) -----------
    B, H, W = 2, 16, 16
    in_channel, out_channel = 4, 8
    L = H * W

    x = jax.random.normal(k1, (B, L, in_channel), dtype=jnp.float32)
    # ConvTranspose2d weight shape: (in_channel, out_channel, 2, 2)
    weight = jax.random.normal(k2, (in_channel, out_channel, 2, 2),
                               dtype=jnp.float32) * 0.1
    bias = jax.random.normal(k3, (out_channel,), dtype=jnp.float32) * 0.1

    ref = _reference(x, weight, bias, (H, W))

    out = jax.block_until_ready(upsample_forward(x, weight, bias, (H, W)))
    assert out.shape == (B, 4 * L, out_channel), out.shape
    assert jnp.allclose(out, ref, atol=1e-4, rtol=1e-4), "mismatch vs reference"

    # bf16 output stream (halves the dominant HBM writeback); accum stays f32.
    out_bf16 = jax.block_until_ready(
        upsample_forward(x, weight, bias, (H, W), out_dtype=jnp.bfloat16))
    assert out_bf16.dtype == jnp.bfloat16
    assert jnp.allclose(out_bf16.astype(jnp.float32), ref,
                        atol=3e-2, rtol=3e-2), "bf16 output mismatch"

    # --- large-channel config exercising the lane-dense split path -----------
    B2, H2, W2 = 1, 8, 8
    ci2, co2 = 32, 64                      # 2*C_out = 128 -> split path
    k4, k5, k6 = jax.random.split(jax.random.PRNGKey(1), 3)
    x2 = jax.random.normal(k4, (B2, H2 * W2, ci2), dtype=jnp.float32)
    w2 = jax.random.normal(k5, (ci2, co2, 2, 2), dtype=jnp.float32) * 0.05
    b2 = jax.random.normal(k6, (co2,), dtype=jnp.float32) * 0.05
    out2 = jax.block_until_ready(upsample_forward(x2, w2, b2, (H2, W2)))
    ref2 = _reference(x2, w2, b2, (H2, W2))
    assert out2.shape == (B2, 4 * H2 * W2, co2), out2.shape
    assert jnp.allclose(out2, ref2, atol=2e-2, rtol=2e-2), "split-path mismatch"

    print("KERNEL_OK")
</pallas_src>

<mosaic_0001>
module attributes {stable_mosaic.version = 11 : i64} {
  func.func @_rowfused_kernel(%arg0: i32, %arg1: memref<16x64xf32, #tpu.memory_space<vmem>>, %arg2: memref<64x512xf32, #tpu.memory_space<vmem>>, %arg3: memref<1x512xf32, #tpu.memory_space<vmem>>, %arg4: memref<16x512xf32, #tpu.memory_space<vmem>>) attributes {dimension_semantics = [#tpu.dimension_semantics<parallel>], iteration_bounds = array<i64: 2>, scalar_prefetch = 0 : i64, scratch_operands = 0 : i64, tpu.core_type = #tpu.core_type<tc>, window_params = [{transform_indices = @transform_0, window_bounds = array<i64: 16, 64>}, {pipeline_mode = #tpu.pipeline_mode<synchronous>, transform_indices = @transform_1, window_bounds = array<i64: 64, 512>}, {pipeline_mode = #tpu.pipeline_mode<synchronous>, transform_indices = @transform_2, window_bounds = array<i64: 1, 512>}, {transform_indices = @transform_3, window_bounds = array<i64: 16, 512>}]} {
    %c0 = arith.constant 0 : index
    %c0_0 = arith.constant 0 : index
    %0 = vector.load %arg1[%c0, %c0_0] : memref<16x64xf32, #tpu.memory_space<vmem>>, vector<16x64xf32>
    %c0_1 = arith.constant 0 : index
    %c0_2 = arith.constant 0 : index
    %1 = vector.load %arg2[%c0_1, %c0_2] : memref<64x512xf32, #tpu.memory_space<vmem>>, vector<64x512xf32>
    %cst = arith.constant dense<0.000000e+00> : vector<16x512xf32>
    %2 = tpu.matmul %0, %1, %cst {dimension_numbers = #tpu.dot_dimension_numbers<[1], [0], [0], [1], [0, 0, 1, 1], [], []>} : vector<16x64xf32>, vector<64x512xf32>, vector<16x512xf32> -> vector<16x512xf32>
    %c0_3 = arith.constant 0 : index
    %c0_4 = arith.constant 0 : index
    %3 = vector.load %arg3[%c0_3, %c0_4] : memref<1x512xf32, #tpu.memory_space<vmem>>, vector<1x512xf32>
    %4 = vector.broadcast %3 : vector<1x512xf32> to vector<16x512xf32>
    %5 = arith.addf %2, %4 : vector<16x512xf32>
    %c0_5 = arith.constant 0 : index
    %c0_6 = arith.constant 0 : index
    %6 = vector.load %arg4[%c0_5, %c0_6] : memref<16x512xf32, #tpu.memory_space<vmem>>, vector<16x512xf32>
    tpu.vector_store %arg4[%c0_5, %c0_6], %5 {strides = array<i32>} : memref<16x512xf32, #tpu.memory_space<vmem>>, vector<16x512xf32>,
    return
  }
  func.func @transform_0(%arg0: i32) -> (i32, i32) {
    %c0_i32 = arith.constant 0 : i32
    %c0_i32_0 = arith.constant 0 : i32
    return %arg0, %c0_i32 : i32, i32
  }
  func.func @transform_1(%arg0: i32) -> (i32, i32) {
    %c0_i32 = arith.constant 0 : i32
    %c0_i32_0 = arith.constant 0 : i32
    %c0_i32_1 = arith.constant 0 : i32
    return %c0_i32, %c0_i32_0 : i32, i32
  }
  func.func @transform_2(%arg0: i32) -> (i32, i32) {
    %c0_i32 = arith.constant 0 : i32
    %c0_i32_0 = arith.constant 0 : i32
    %c0_i32_1 = arith.constant 0 : i32
    return %c0_i32, %c0_i32_0 : i32, i32
  }
  func.func @transform_3(%arg0: i32) -> (i32, i32) {
    %c0_i32 = arith.constant 0 : i32
    %c0_i32_0 = arith.constant 0 : i32
    return %arg0, %c0_i32 : i32, i32
  }
}

</mosaic_0001>

<llo_original>
// kernel: tpu_custom_call.1
$region0: #{tpu_custom_call.1}
  #allocation0 [shape = 'u32[]', space=smem, size = 0x4, offset = 0x4, fixed_abs, tag = 'smem constant byte address 0x4 - core index']
  #allocation1 [shape = 'u32[144,128]{1,0:T(1,128)}', space=vmem, size = 0x12000, scoped, tag = 'internal scratch']
  %s0 = inlined_call_operand.hbm [shape: f32[32,64], index: 0, kind: input, shape index: {}]
  %s1 = inlined_call_operand.hbm [shape: f32[64,512], index: 1, kind: input, shape index: {}]
  %s2 = inlined_call_operand.vmem [shape: f32[1,512], index: 2, kind: input, shape index: {}]
  %s3 = inlined_call_operand.hbm [shape: f32[32,512], index: 3, kind: output, shape index: {}]
  %s4 = sld [smem:[#allocation0]]
  $region53: #{tpu_custom_call.1} parent=0
    _
  %s6 = ssub.s32 1, %s4
  %s7 = scalar_select 0, %s6, %s4
  $region1: #{tpu_custom_call.1} parent=0
    #allocation2 [shape = 'u8[16384]{0}', space=vmem, size = 0x4000, scoped, tag = 'input window, operand 0']
    #allocation3 [shape = 's32[2]{0}', space=sflag, size = 0x8, scoped, tag = 'scoped memory for tpu_custom_call.1']
    #allocation4 [shape = 's32[2]{0}', space=sflag, size = 0x8, scoped, tag = 'scoped memory for tpu_custom_call.1']
    #allocation5 [shape = 'u8[131072]{0}', space=vmem, size = 0x20000, scoped, tag = 'input window, operand 1, single buffered']
    #allocation6 [shape = 's32[1]{0}', space=sflag, size = 0x4, scoped, tag = 'scoped memory for tpu_custom_call.1']
    #allocation7 [shape = 'u8[65536]{0}', space=vmem, size = 0x10000, scoped, tag = 'output window, operand 0']
    %8 = vsyncpa [#allocation3], 0
    %s9 = scalar_lea.sflag [#allocation3], 1
    %10 = vsyncpa %s9, 0
    %11 = vsyncpa [#allocation6], 0
    %12 = vsyncpa [#allocation4], 0
    %s13 = scalar_lea.sflag [#allocation4], 1
    %14 = vsyncpa %s13, 0
    loop: start=0, step=1, limit=4
    $region2: #{tpu_custom_call.1} parent=1 // loop_pre_header
      _
    $region3: #{tpu_custom_call.1} parent=1 // loop_header
      %s16 = sphi 0, %s20
      %p17 = scmp.ge.s32.totalorder %s16, 4
      %s26 = sphi 0, %s28
      %s29 = sphi 0, %s26
      %s30 = sphi 0, %s29
      %s46 = sphi 0, %s30
      %s50 = sphi 0, %s50
      %s52 = sphi 0, %s50
      %s53 = sphi 0, %s52
      %s67 = sphi 0, %s53
      %s71 = sphi 0, %s71
      %s73 = sphi 0, %s71
      %s74 = sphi 0, %s73
      %s88 = sphi 0, %s74
      %s94 = sphi 0, %s96
      %s97 = sphi 0, %s94
      %s98 = sphi 0, %s97
      %s114 = sphi 0, %s98
    $region4: #{tpu_custom_call.1} parent=1 // loop_header_branch
      %19 = sbr.rel (%p17) target = $region8
    $region5: #{tpu_custom_call.1} parent=1 // loop_body
      %s21 = ssub.s32 %s16, 1
      %s22 = ssub.s32 %s16, 2
      %s23 = sadd.s32 %s16, 1
      %s24 = ssub.s32 %s16, %s23
      %p25 = scmp.eq.s32.totalorder %s24, 0
      %s27 = sadd.s32 %s26, 1
      %s28 = scalar_select %p25, %s26, %s27
      %p31 = pneg %p25
      %p32 = scmp.eq.s32.totalorder %s16, 1
      %p33 = por %p31, %p32
      %p34 = scmp.ne.s32.totalorder %s26, %s29
      %p35 = scmp.eq.s32.totalorder %s16, 0
      %p36 = por %p34, %p35
      %p37 = scmp.ne.s32.totalorder %s26, %s29
      %p38 = scmp.eq.s32.totalorder %s21, 1
      %p39 = por %p37, %p38
      %p40 = scmp.ne.s32.totalorder %s29, %s30
      %p41 = scmp.eq.s32.totalorder %s21, 0
      %p42 = por %p40, %p41
      %p43 = scmp.ne.s32.totalorder %s29, %s30
      %p44 = scmp.eq.s32.totalorder %s22, 1
      %p45 = por %p43, %p44
      %p47 = scmp.ne.s32.totalorder %s30, %s46
      %p48 = scmp.eq.s32.totalorder %s22, 0
      %p49 = por %p47, %p48
      %s51 = sadd.s32 %s50, 1
      %p54 = scmp.eq.s32.totalorder %s16, 1
      %p55 = scmp.ne.s32.totalorder %s50, %s52
      %p56 = scmp.eq.s32.totalorder %s16, 0
      %p57 = por %p55, %p56
      %p58 = scmp.ne.s32.totalorder %s50, %s52
      %p59 = scmp.eq.s32.totalorder %s21, 1
      %p60 = por %p58, %p59
      %p61 = scmp.ne.s32.totalorder %s52, %s53
      %p62 = scmp.eq.s32.totalorder %s21, 0
      %p63 = por %p61, %p62
      %p64 = scmp.ne.s32.totalorder %s52, %s53
      %p65 = scmp.eq.s32.totalorder %s22, 1
      %p66 = por %p64, %p65
      %p68 = scmp.ne.s32.totalorder %s53, %s67
      %p69 = scmp.eq.s32.totalorder %s22, 0
      %p70 = por %p68, %p69
      %s72 = sadd.s32 %s71, 1
      %p75 = scmp.eq.s32.totalorder %s16, 1
      %p76 = scmp.ne.s32.totalorder %s71, %s73
      %p77 = scmp.eq.s32.totalorder %s16, 0
      %p78 = por %p76, %p77
      %p79 = scmp.ne.s32.totalorder %s71, %s73
      %p80 = scmp.eq.s32.totalorder %s21, 1
      %p81 = por %p79, %p80
      %p82 = scmp.ne.s32.totalorder %s73, %s74
      %p83 = scmp.eq.s32.totalorder %s21, 0
      %p84 = por %p82, %p83
      %p85 = scmp.ne.s32.totalorder %s73, %s74
      %p86 = scmp.eq.s32.totalorder %s22, 1
      %p87 = por %p85, %p86
      %p89 = scmp.ne.s32.totalorder %s74, %s88
      %p90 = scmp.eq.s32.totalorder %s22, 0
      %p91 = por %p89, %p90
      %s92 = ssub.s32 %s16, %s23
      %p93 = scmp.eq.s32.totalorder %s92, 0
      %s95 = sadd.s32 %s94, 1
      %s96 = scalar_select %p93, %s94, %s95
      %p99 = pneg %p93
      %p100 = scmp.eq.s32.totalorder %s16, 1
      %p101 = por %p99, %p100
      %p102 = scmp.ne.s32.totalorder %s94, %s97
      %p103 = scmp.eq.s32.totalorder %s16, 0
      %p104 = por %p102, %p103
      %p105 = scmp.ne.s32.totalorder %s94, %s97
      %p106 = scmp.eq.s32.totalorder %s21, 1
      %p107 = por %p105, %p106
      %p108 = scmp.ne.s32.totalorder %s97, %s98
      %p109 = scmp.eq.s32.totalorder %s21, 0
      %p110 = por %p108, %p109
      %p111 = scmp.ne.s32.totalorder %s97, %s98
      %p112 = scmp.eq.s32.totalorder %s22, 1
      %p113 = por %p111, %p112
      %p115 = scmp.ne.s32.totalorder %s98, %s114
      %p116 = scmp.eq.s32.totalorder %s22, 0
      %p117 = por %p115, %p116
      %p118 = scmp.le.s32.totalorder 1, %s16
      %p119 = scmp.lt.s32.totalorder %s16, 3
      %p120 = pnand %p118, %p119
      %p121 = pneg %p120
      // Predicated region
      $region9: #{tpu_custom_call.1} parent=5 // pred_check
        _
      $region10: #{tpu_custom_call.1} parent=5 // pred_check_branch
        %123 = sbr.rel (%p120) target = $region12
      $region11: #{tpu_custom_call.1} parent=5 // pred_region
        %s124 = ssub.s32 %s16, 1
        // Predicated region
        $region13: #{tpu_custom_call.1} parent=11 // pred_check
          %p125 = pneg %p63
        $region14: #{tpu_custom_call.1} parent=11 // pred_check_branch
          %127 = sbr.rel (%p125) target = $region16
        $region15: #{tpu_custom_call.1} parent=11 // pred_region
          %s129 = ssub.s32 4096, 4096
          %130 = vsyncadd [#allocation6], %s129
          %s131 = sshll.u32 [#allocation5], 4
          %s132 = int_to_ptr.vmem [resolvable:$true] %s131
          %137 = dma.hbm_to_vmem [thread:$0]  %s1, 4096, %s132, [#allocation6], 512, 512, 32
        $region16: #{tpu_custom_call.1} parent=11 // pred_fallthru
          _
        // Predicated region
        $region17: #{tpu_custom_call.1} parent=11 // pred_check
          %p138 = pneg %p84
        $region18: #{tpu_custom_call.1} parent=11 // pred_check_branch
          %140 = sbr.rel (%p138) target = $region20
        $region19: #{tpu_custom_call.1} parent=11 // pred_region
          _
        $region20: #{tpu_custom_call.1} parent=11 // pred_fallthru
          _
      $region12: #{tpu_custom_call.1} parent=5 // pred_fallthru
        _
      %p141 = scmp.lt.s32.totalorder %s16, 2
      // Predicated region
      $region21: #{tpu_custom_call.1} parent=5 // pred_check
        %p142 = pneg %p141
      $region22: #{tpu_custom_call.1} parent=5 // pred_check_branch
        %144 = sbr.rel (%p142) target = $region24
      $region23: #{tpu_custom_call.1} parent=5 // pred_region
        // Predicated region
        $region25: #{tpu_custom_call.1} parent=23 // pred_check
          %p145 = pneg %p36
        $region26: #{tpu_custom_call.1} parent=23 // pred_check_branch
          %147 = sbr.rel (%p145) target = $region28
        $region27: #{tpu_custom_call.1} parent=23 // pred_region
          %s148 = sand.u32 %s26, 1
          %s149 = scalar_lea.sflag [#allocation3], %s148
          %s150 = sand.u32 %s26, 1
          %s151 = smul.addr %s150, 16
          %s152 = scalar_lea.vmem [#allocation2], %s151
          %s153 = smul.u32 2, %s16
          %s155 = ssub.s32 256, 256
          %156 = vsyncadd %s149, %s155
          %s157 = smul.addr %s153, 128
          %s158 = scalar_lea.hbm %s0, %s157
          %s159 = sshll.u32 %s152, 4
          %s160 = int_to_ptr.vmem [resolvable:$true] %s159
          %165 = dma.hbm_to_vmem [thread:$0]  %s158, 256, %s160, %s149, 128, 128, 8
        $region28: #{tpu_custom_call.1} parent=23 // pred_fallthru
          _
      $region24: #{tpu_custom_call.1} parent=5 // pred_fallthru
        _
      %p166 = scmp.le.s32.totalorder 1, %s16
      %p167 = scmp.lt.s32.totalorder %s16, 3
      %p168 = pnand %p166, %p167
      %p169 = pneg %p168
      // Predicated region
      $region29: #{tpu_custom_call.1} parent=5 // pred_check
        _
      $region30: #{tpu_custom_call.1} parent=5 // pred_check_branch
        %171 = sbr.rel (%p168) target = $region32
      $region31: #{tpu_custom_call.1} parent=5 // pred_region
        %s172 = ssub.s32 %s16, 1
        %s173 = sand.u32 %s29, 1
        %s174 = scalar_lea.sflag [#allocation3], %s173
        %s175 = sand.u32 %s29, 1
        %s176 = smul.addr %s175, 16
        %s177 = scalar_lea.vmem [#allocation2], %s176
        // Predicated region
        $region33: #{tpu_custom_call.1} parent=31 // pred_check
          %p178 = pneg %p42
        $region34: #{tpu_custom_call.1} parent=31 // pred_check_branch
          %180 = sbr.rel (%p178) target = $region36
        $region35: #{tpu_custom_call.1} parent=31 // pred_region
          %181 = dma.done %s174, 256
        $region36: #{tpu_custom_call.1} parent=31 // pred_fallthru
          _
        // Predicated region
        $region37: #{tpu_custom_call.1} parent=31 // pred_check
          %p182 = pneg %p63
        $region38: #{tpu_custom_call.1} parent=31 // pred_check_branch
          %184 = sbr.rel (%p182) target = $region40
        $region39: #{tpu_custom_call.1} parent=31 // pred_region
          %185 = dma.done [#allocation6], 4096
        $region40: #{tpu_custom_call.1} parent=31 // pred_fallthru
          _
        %s186 = sand.u32 %s29, 1
        %s187 = scalar_lea.sflag [#allocation3], %s186
        %s188 = sand.u32 %s29, 1
        %s189 = smul.addr %s188, 16
        %s190 = scalar_lea.vmem [#allocation2], %s189
        %p191 = pneg %p42
        %p192 = pneg %p39
        %p193 = pneg %p63
        %p194 = pneg %p60
        %p195 = pneg %p84
        %p196 = pneg %p81
        %p197 = pneg %p110
        %p198 = pneg %p107
        %s199 = sand.u32 %s97, 1
        %s200 = scalar_lea.sflag [#allocation4], %s199
        %s201 = sand.u32 %s97, 1
        %s202 = smul.addr %s201, 64
        %s203 = scalar_lea.vmem [#allocation7], %s202
        %s204 = smul.u32 2, %s21
        %s205 = smul.u32 2, %s21
        %v206 = vld [vmem:[%s177] sm:$0xff]
        %v207 = vld [vmem:[%s177 + $0x8] sm:$0xff]
        %v208 = vld [vmem:[#allocation5] sm:$0xff]
        %v209 = vld [vmem:[#allocation5 + $0x8] sm:$0xff]
        %v210 = vld [vmem:[#allocation5 + $0x10] sm:$0xff]
        %v211 = vld [vmem:[#allocation5 + $0x18] sm:$0xff]
        %v212 = vld [vmem:[#allocation5 + $0x20] sm:$0xff]
        %v213 = vld [vmem:[#allocation5 + $0x28] sm:$0xff]
        %v214 = vld [vmem:[#allocation5 + $0x30] sm:$0xff]
        %v215 = vld [vmem:[#allocation5 + $0x38] sm:$0xff]
        %v216 = vld [vmem:[#allocation5 + $0x40] sm:$0xff]
        %v217 = vld [vmem:[#allocation5 + $0x48] sm:$0xff]
        %v218 = vld [vmem:[#allocation5 + $0x50] sm:$0xff]
        %v219 = vld [vmem:[#allocation5 + $0x58] sm:$0xff]
        %v220 = vld [vmem:[#allocation5 + $0x60] sm:$0xff]
        %v221 = vld [vmem:[#allocation5 + $0x68] sm:$0xff]
        %v222 = vld [vmem:[#allocation5 + $0x70] sm:$0xff]
        %v223 = vld [vmem:[#allocation5 + $0x78] sm:$0xff]
        %v224 = vld [vmem:[#allocation5 + $0x80] sm:$0xff]
        %v225 = vld [vmem:[#allocation5 + $0x88] sm:$0xff]
        %v226 = vld [vmem:[#allocation5 + $0x90] sm:$0xff]
        %v227 = vld [vmem:[#allocation5 + $0x98] sm:$0xff]
        %v228 = vld [vmem:[#allocation5 + $0xa0] sm:$0xff]
        %v229 = vld [vmem:[#allocation5 + $0xa8] sm:$0xff]
        %v230 = vld [vmem:[#allocation5 + $0xb0] sm:$0xff]
        %v231 = vld [vmem:[#allocation5 + $0xb8] sm:$0xff]
        %v232 = vld [vmem:[#allocation5 + $0xc0] sm:$0xff]
        %v233 = vld [vmem:[#allocation5 + $0xc8] sm:$0xff]
        %v234 = vld [vmem:[#allocation5 + $0xd0] sm:$0xff]
        %v235 = vld [vmem:[#allocation5 + $0xd8] sm:$0xff]
        %v236 = vld [vmem:[#allocation5 + $0xe0] sm:$0xff]
        %v237 = vld [vmem:[#allocation5 + $0xe8] sm:$0xff]
        %v238 = vld [vmem:[#allocation5 + $0xf0] sm:$0xff]
        %v239 = vld [vmem:[#allocation5 + $0xf8] sm:$0xff]
        %v240 = vld [vmem:[%s2] sm:$0xf]
        %v242 = vlaneseq
        %v243 = vshrl.u32 %v242, 7
        %v244 = vsub.s32 0, %v243
        %v245 = vrot.slane %v240, %v244
        %v246 = vlaneseq
        %v247 = vshrl.u32 %v246, 7
        %v248 = vsub.s32 1, %v247
        %v249 = vrot.slane %v240, %v248
        %v250 = vlaneseq
        %v251 = vshrl.u32 %v250, 7
        %v252 = vsub.s32 2, %v251
        %v253 = vrot.slane %v240, %v252
        %v254 = vlaneseq
        %v255 = vshrl.u32 %v254, 7
        %v256 = vsub.s32 3, %v255
        %v257 = vrot.slane %v240, %v256
        %vm262 = vcmask 523264
        %v264 = vsel %vm262, %v206, 0
        %v267 = vsel %vm262, %v207, 0
        %269 = vmatprep.subr.mxu0 %v209
        %270 = vmatpush1.msra.mxu0 %v208
        %271 = vmatprep.subr.mxu0 %v213
        %272 = vmatpush1.msra.mxu0 %v212
        %273 = vmatprep.subr.mxu0 %v217
        %274 = vmatpush1.msra.mxu0 %v216
        %275 = vmatprep.subr.mxu0 %v221
        %276 = vmatpush1.msra.mxu0 %v220
        %277 = vmatprep.subr.mxu0 %v225
        %278 = vmatpush1.msra.mxu0 %v224
        %279 = vmatprep.subr.mxu0 %v229
        %280 = vmatpush1.msra.mxu0 %v228
        %281 = vmatprep.subr.mxu0 %v233
        %282 = vmatpush1.msra.mxu0 %v232
        %283 = vmatprep.subr.mxu0 %v237
        %284 = vmatpush1.msra.mxu0 %v236
        %285 = vmatprep.subr.mxu0 0.0
        %286 = vmatpush1.msra.mxu0 0.0
        %287 = vmatprep.subr.mxu0 0.0
        %288 = vmatpush1.msra.mxu0 0.0
        %289 = vmatprep.subr.mxu0 0.0
        %290 = vmatpush1.msra.mxu0 0.0
        %291 = vmatprep.subr.mxu0 0.0
        %292 = vmatpush1.msra.mxu0 0.0
        %293 = vmatprep.subr.mxu0 0.0
        %294 = vmatpush1.msra.mxu0 0.0
        %295 = vmatprep.subr.mxu0 0.0
        %296 = vmatpush1.msra.mxu0 0.0
        %297 = vmatprep.subr.mxu0 0.0
        %298 = vmatpush1.msra.mxu0 0.0
        %299 = vmatprep.subr.mxu0 0.0
        %300 = vmatpush1.msra.mxu0 0.0
        %301 = vmatprep.subr.mxu0 0.0
        %302 = vmatpush1.msra.mxu0 0.0
        %303 = vmatprep.subr.mxu0 0.0
        %304 = vmatpush1.msra.mxu0 0.0
        %305 = vmatprep.subr.mxu0 0.0
        %306 = vmatpush1.msra.mxu0 0.0
        %307 = vmatprep.subr.mxu0 0.0
        %308 = vmatpush1.msra.mxu0 0.0
        %309 = vmatprep.subr.mxu0 0.0
        %310 = vmatpush1.msra.mxu0 0.0
        %311 = vmatprep.subr.mxu0 0.0
        %312 = vmatpush1.msra.mxu0 0.0
        %313 = vmatprep.subr.mxu0 0.0
        %314 = vmatpush1.msra.mxu0 0.0
        %315 = vmatprep.subr.mxu0 0.0
        %316 = vmatpush1.msra.mxu0 0.0
        %317 = vmatprep.subr.mxu0 0.0
        %318 = vmatpush1.msra.mxu0 0.0
        %319 = vmatprep.subr.mxu0 0.0
        %320 = vmatpush1.msra.mxu0 0.0
        %321 = vmatprep.subr.mxu0 0.0
        %322 = vmatpush1.msra.mxu0 0.0
        %323 = vmatprep.subr.mxu0 0.0
        %324 = vmatpush1.msra.mxu0 0.0
        %325 = vmatprep.subr.mxu0 0.0
        %326 = vmatpush1.msra.mxu0 0.0
        %327 = vmatprep.subr.mxu0 0.0
        %328 = vmatpush1.msra.mxu0 0.0
        %329 = vmatprep.subr.mxu0 0.0
        %330 = vmatpush1.msra.mxu0 0.0
        %331 = vmatprep.subr.mxu0 0.0
        %332 = vmatpush1.msra.mxu0 0.0
        %333 = vmatprep.mubr.f32.mxu0 0.0
        %334 = vmatmul.mubr.f32.gmra.mrb[0].mxu0 %v264
        %v335 = vpop.f32.mrb[0].mxu0
        %v336 = vadd.f32 %v245, %v335
        %v337 = vpop.f32.mrb[0].mxu0
        %v338 = vadd.f32 %v249, %v337
        %339 = vmatprep.mubr.f32.mxu0 0.0
        %340 = vmatmul.mubr.f32.gmra.mrb[0].mxu0 %v267
        %v341 = vpop.f32.mrb[0].mxu0
        %v342 = vadd.f32 %v245, %v341
        %v343 = vpop.f32.mrb[0].mxu0
        %v344 = vadd.f32 %v249, %v343
        %345 = vdwg.mxu0
        %346 = vmatprep.subr.mxu0 %v211
        %347 = vmatpush1.msra.mxu0 %v210
        %348 = vmatprep.subr.mxu0 %v215
        %349 = vmatpush1.msra.mxu0 %v214
        %350 = vmatprep.subr.mxu0 %v219
        %351 = vmatpush1.msra.mxu0 %v218
        %352 = vmatprep.subr.mxu0 %v223
        %353 = vmatpush1.msra.mxu0 %v222
        %354 = vmatprep.subr.mxu0 %v227
        %355 = vmatpush1.msra.mxu0 %v226
        %356 = vmatprep.subr.mxu0 %v231
        %357 = vmatpush1.msra.mxu0 %v230
        %358 = vmatprep.subr.mxu0 %v235
        %359 = vmatpush1.msra.mxu0 %v234
        %360 = vmatprep.subr.mxu0 %v239
        %361 = vmatpush1.msra.mxu0 %v238
        %362 = vmatprep.subr.mxu0 0.0
        %363 = vmatpush1.msra.mxu0 0.0
        %364 = vmatprep.subr.mxu0 0.0
        %365 = vmatpush1.msra.mxu0 0.0
        %366 = vmatprep.subr.mxu0 0.0
        %367 = vmatpush1.msra.mxu0 0.0
        %368 = vmatprep.subr.mxu0 0.0
        %369 = vmatpush1.msra.mxu0 0.0
        %370 = vmatprep.subr.mxu0 0.0
        %371 = vmatpush1.msra.mxu0 0.0
        %372 = vmatprep.subr.mxu0 0.0
        %373 = vmatpush1.msra.mxu0 0.0
        %374 = vmatprep.subr.mxu0 0.0
        %375 = vmatpush1.msra.mxu0 0.0
        %376 = vmatprep.subr.mxu0 0.0
        %377 = vmatpush1.msra.mxu0 0.0
        %378 = vmatprep.subr.mxu0 0.0
        %379 = vmatpush1.msra.mxu0 0.0
        %380 = vmatprep.subr.mxu0 0.0
        %381 = vmatpush1.msra.mxu0 0.0
        %382 = vmatprep.subr.mxu0 0.0
        %383 = vmatpush1.msra.mxu0 0.0
        %384 = vmatprep.subr.mxu0 0.0
        %385 = vmatpush1.msra.mxu0 0.0
        %386 = vmatprep.subr.mxu0 0.0
        %387 = vmatpush1.msra.mxu0 0.0
        %388 = vmatprep.subr.mxu0 0.0
        %389 = vmatpush1.msra.mxu0 0.0
        %390 = vmatprep.subr.mxu0 0.0
        %391 = vmatpush1.msra.mxu0 0.0
        %392 = vmatprep.subr.mxu0 0.0
        %393 = vmatpush1.msra.mxu0 0.0
        %394 = vmatprep.subr.mxu0 0.0
        %395 = vmatpush1.msra.mxu0 0.0
        %396 = vmatprep.subr.mxu0 0.0
        %397 = vmatpush1.msra.mxu0 0.0
        %398 = vmatprep.subr.mxu0 0.0
        %399 = vmatpush1.msra.mxu0 0.0
        %400 = vmatprep.subr.mxu0 0.0
        %401 = vmatpush1.msra.mxu0 0.0
        %402 = vmatprep.subr.mxu0 0.0
        %403 = vmatpush1.msra.mxu0 0.0
        %404 = vmatprep.subr.mxu0 0.0
        %405 = vmatpush1.msra.mxu0 0.0
        %406 = vmatprep.subr.mxu0 0.0
        %407 = vmatpush1.msra.mxu0 0.0
        %408 = vmatprep.subr.mxu0 0.0
        %409 = vmatpush1.msra.mxu0 0.0
        %410 = vmatprep.mubr.f32.mxu0 0.0
        %411 = vmatmul.mubr.f32.gmra.mrb[0].mxu0 %v264
        %v412 = vpop.f32.mrb[0].mxu0
        %v413 = vadd.f32 %v253, %v412
        %v414 = vpop.f32.mrb[0].mxu0
        %v415 = vadd.f32 %v257, %v414
        %416 = vmatprep.mubr.f32.mxu0 0.0
        %417 = vmatmul.mubr.f32.gmra.mrb[0].mxu0 %v267
        %v418 = vpop.f32.mrb[0].mxu0
        %v419 = vadd.f32 %v253, %v418
        %v420 = vpop.f32.mrb[0].mxu0
        %v421 = vadd.f32 %v257, %v420
        %422 = vdwg.mxu0
        %423 = vst [vmem:[%s203] sm:$0xff] %v336
        %424 = vst [vmem:[%s203 + $0x8] sm:$0xff] %v338
        %425 = vst [vmem:[%s203 + $0x10] sm:$0xff] %v413
        %426 = vst [vmem:[%s203 + $0x18] sm:$0xff] %v415
        %427 = vst [vmem:[%s203 + $0x20] sm:$0xff] %v342
        %428 = vst [vmem:[%s203 + $0x28] sm:$0xff] %v344
        %429 = vst [vmem:[%s203 + $0x30] sm:$0xff] %v419
        %430 = vst [vmem:[%s203 + $0x38] sm:$0xff] %v421
        %s431 = sand.u32 %s97, 1
        %s432 = scalar_lea.sflag [#allocation4], %s431
        %s433 = sand.u32 %s97, 1
        %s434 = smul.addr %s433, 64
        %s435 = scalar_lea.vmem [#allocation7], %s434
        // Predicated region
        $region41: #{tpu_custom_call.1} parent=31 // pred_check
          %p436 = pneg %p107
        $region42: #{tpu_custom_call.1} parent=31 // pred_check_branch
          %438 = sbr.rel (%p436) target = $region44
        $region43: #{tpu_custom_call.1} parent=31 // pred_region
          %s439 = smul.u32 2, %s21
          %s441 = ssub.s32 1024, 1024
          %442 = vsyncadd %s432, %s441
          %s443 = smul.addr %s439, 4
          %s444 = smul.addr %s443, 128
          %s445 = scalar_lea.hbm %s3, %s444
          %s446 = sshll.u32 %s435, 4
          %s447 = int_to_ptr.vmem [resolvable:$true] %s446
          %452 = dma.vmem_to_hbm [thread:$0]  %s447, 1024, %s445, %s432, 512, 512, 32
        $region44: #{tpu_custom_call.1} parent=31 // pred_fallthru
          _
      $region32: #{tpu_custom_call.1} parent=5 // pred_fallthru
        _
      %p453 = scmp.le.s32.totalorder 2, %s16
      // Predicated region
      $region45: #{tpu_custom_call.1} parent=5 // pred_check
        %p454 = pneg %p453
      $region46: #{tpu_custom_call.1} parent=5 // pred_check_branch
        %456 = sbr.rel (%p454) target = $region48
      $region47: #{tpu_custom_call.1} parent=5 // pred_region
        %s457 = ssub.s32 %s16, 2
        // Predicated region
        $region49: #{tpu_custom_call.1} parent=47 // pred_check
          %p458 = pneg %p113
        $region50: #{tpu_custom_call.1} parent=47 // pred_check_branch
          %460 = sbr.rel (%p458) target = $region52
        $region51: #{tpu_custom_call.1} parent=47 // pred_region
          %s461 = sand.u32 %s98, 1
          %s462 = scalar_lea.sflag [#allocation4], %s461
          %s463 = sand.u32 %s98, 1
          %s464 = smul.addr %s463, 64
          %s465 = scalar_lea.vmem [#allocation7], %s464
          %466 = dma.done %s462, 1024
        $region52: #{tpu_custom_call.1} parent=47 // pred_fallthru
          _
      $region48: #{tpu_custom_call.1} parent=5 // pred_fallthru
        _
    $region6: #{tpu_custom_call.1} parent=1 // loop_footer
      %s20 = sadd.s32 1, %s16
    $region7: #{tpu_custom_call.1} parent=1 // loop_footer_branch
      %15 = sbr.rel target = $region3
    $region8: #{tpu_custom_call.1} parent=1 // loop_exit
      _
    %467 = vsyncpa [#allocation3], 1
    %s468 = scalar_lea.sflag [#allocation3], 1
    %469 = vsyncpa %s468, 1
    %470 = vsyncpa [#allocation6], 1
    %471 = vsyncpa [#allocation4], 1
    %s472 = scalar_lea.sflag [#allocation4], 1
    %473 = vsyncpa %s472, 1

</llo_original>
